<compile_context>
chip_gen: v6e
topology: v6e:2x2x1
jax: 0.10.0
libtpu: 0.0.40
codegen_flags: <defaults>
</compile_context>

<pallas_src>
import math

import jax
import jax.numpy as jnp
from jax.experimental import pallas as pl
from jax.experimental.pallas import tpu as pltpu

_TILE_BYTES = 4 * 1024 * 1024          # ~4 MiB per input tile
_VMEM_LIMIT = 32 * 1024 * 1024         # above v5e's 16 MiB scoped default
_SMALL_UNALIGNED_MAX = 1 << 18         # elems; (1, N) full block stays well under VMEM


def _superblock_kernel(x_ref, o_ref):
    # blocks(x) == x and resample(x) == x (nn.Identity), squeeze is None,
    # so the pre-activation residual add reduces to out = x + x.
    x = x_ref[...]
    o_ref[...] = x + x


def _grid_semantics(num_steps):
    """CORE_PARALLEL on v7x (2 TCs) when there is work to split; else 'parallel'."""
    kind = ""
    try:
        kind = jax.devices()[0].device_kind.lower()
    except Exception:
        pass
    core_parallel = getattr(pltpu, "CORE_PARALLEL", None)
    if core_parallel is not None and num_steps >= 2 and ("v7" in kind or "7x" in kind):
        return (core_parallel,)
    return ("parallel",)


def _double_2d(x2d, tile_rows, total, itemsize, alias_input):
    rows, lane = x2d.shape
    grid = (pl.cdiv(rows, tile_rows),)
    return pl.pallas_call(
        _superblock_kernel,
        out_shape=jax.ShapeDtypeStruct((rows, lane), x2d.dtype),
        grid=grid,
        in_specs=[pl.BlockSpec((tile_rows, lane), lambda i: (i, 0))],
        out_specs=pl.BlockSpec((tile_rows, lane), lambda i: (i, 0)),
        compiler_params=pltpu.CompilerParams(
            dimension_semantics=_grid_semantics(grid[0]),
            vmem_limit_bytes=_VMEM_LIMIT,
        ),
        cost_estimate=pl.CostEstimate(
            flops=total, transcendentals=0, bytes_accessed=2 * total * itemsize),
        input_output_aliases=({0: 0} if alias_input else {}),
    )(x2d)


def _superblock_forward_impl(x, sample_length=None, *, in_planes=None,
                             out_planes=None, alias_input=False):
    """Pre-activation residual block, base-class path: out = blocks(x) + identity == 2*x.

    TODO(synk): subclasses overriding blocks/resample/squeeze (real convs,
    SE gating on sample_length-pooled features) are not covered by this kernel.
    """
    del sample_length, in_planes, out_planes  # unused on the Identity path
    orig_shape = x.shape
    total = math.prod(orig_shape)
    itemsize = jnp.dtype(x.dtype).itemsize
    flat = x.reshape(-1)

    # Lane-dense layout: largest lane width in {1024,...,128} dividing total.
    lane = next((l for l in (1024, 512, 256, 128) if total % l == 0), None)

    if lane is not None:
        rows = total // lane
        target_rows = max(8, (_TILE_BYTES // (lane * itemsize)) // 8 * 8)
        tr = rows if rows <= target_rows else target_rows
        out2d = _double_2d(flat.reshape(rows, lane), tr, total, itemsize, alias_input)
        return out2d.reshape(orig_shape)

    if total <= _SMALL_UNALIGNED_MAX:
        # Small non-128-multiple element count (e.g. H=W=7): one full-extent
        # (1, total) block; masked tail vreg in-kernel, no pad / slice passes.
        out2d = _double_2d(flat.reshape(1, total), 1, total, itemsize, alias_input)
        return out2d.reshape(orig_shape)

    # Rare corner: large activation whose element count is not a multiple of 128.
    # TODO(synk): stream this case without the pad/slice HBM round-trip.
    pad = (-total) % 128
    padded = jnp.pad(flat, (0, pad))
    rows = (total + pad) // 128
    target_rows = max(8, (_TILE_BYTES // (128 * itemsize)) // 8 * 8)
    tr = rows if rows <= target_rows else target_rows
    out2d = _double_2d(padded.reshape(rows, 128), tr, total + pad, itemsize, False)
    return out2d.reshape(-1)[:total].reshape(orig_shape)


# Whole forward (reshape -> pallas_call -> reshape) compiled as one program.
superblock_forward = jax.jit(
    _superblock_forward_impl,
    static_argnames=("in_planes", "out_planes", "alias_input"))


if __name__ == "__main__":
    key = jax.random.PRNGKey(0)

    # Small NCHW input consistent with a conv-block activation.
    N, C, H, W = 2, 4, 16, 16
    x = jax.random.normal(key, (N, C, H, W), dtype=jnp.float32)
    sample_length = jnp.full((N,), H * W, dtype=jnp.int32)  # accepted, unused (squeeze is None)

    y = superblock_forward(x, sample_length, in_planes=C, out_planes=C)
    y = jax.block_until_ready(y)

    ref = x + x
    assert y.shape == x.shape and y.dtype == x.dtype
    assert jnp.allclose(y, ref, atol=1e-6), "mismatch vs. reference"

    # Guard check: non-128-multiple element count (H=W=7) exercises the
    # pad-free (1, total) full-extent-block fallback path.
    x2 = jax.random.normal(jax.random.PRNGKey(1), (2, 3, 7, 7), dtype=jnp.float32)
    y2 = jax.block_until_ready(superblock_forward(x2, None, in_planes=3, out_planes=3))
    assert y2.shape == x2.shape and jnp.allclose(y2, x2 + x2, atol=1e-6)

    print("KERNEL_OK")
</pallas_src>

<mosaic_0001>
module attributes {stable_mosaic.version = 11 : i64} {
  func.func @_superblock_kernel(%arg0: i32, %arg1: memref<2x1024xf32, #tpu.memory_space<vmem>>, %arg2: memref<2x1024xf32, #tpu.memory_space<vmem>>) attributes {dimension_semantics = [#tpu.dimension_semantics<parallel>], iteration_bounds = array<i64: 1>, scalar_prefetch = 0 : i64, scratch_operands = 0 : i64, tpu.core_type = #tpu.core_type<tc>, window_params = [{transform_indices = @transform_0, window_bounds = array<i64: 2, 1024>}, {transform_indices = @transform_1, window_bounds = array<i64: 2, 1024>}]} {
    %c0 = arith.constant 0 : index
    %c0_0 = arith.constant 0 : index
    %0 = vector.load %arg1[%c0, %c0_0] : memref<2x1024xf32, #tpu.memory_space<vmem>>, vector<2x1024xf32>
    %1 = arith.addf %0, %0 : vector<2x1024xf32>
    %c0_1 = arith.constant 0 : index
    %c0_2 = arith.constant 0 : index
    %2 = vector.load %arg2[%c0_1, %c0_2] : memref<2x1024xf32, #tpu.memory_space<vmem>>, vector<2x1024xf32>
    tpu.vector_store %arg2[%c0_1, %c0_2], %1 {strides = array<i32>} : memref<2x1024xf32, #tpu.memory_space<vmem>>, vector<2x1024xf32>,
    return
  }
  func.func @transform_0(%arg0: i32) -> (i32, i32) {
    %c0_i32 = arith.constant 0 : i32
    %c0_i32_0 = arith.constant 0 : i32
    return %arg0, %c0_i32 : i32, i32
  }
  func.func @transform_1(%arg0: i32) -> (i32, i32) {
    %c0_i32 = arith.constant 0 : i32
    %c0_i32_0 = arith.constant 0 : i32
    return %arg0, %c0_i32 : i32, i32
  }
}

</mosaic_0001>

<llo_original>
// kernel: _superblock_forward_impl.1
$region0: #{_superblock_forward_impl.1}
  #allocation0 [shape = 'u32[]', space=smem, size = 0x4, offset = 0x4, fixed_abs, tag = 'smem constant byte address 0x4 - core index']
  #allocation1 [shape = 'u32[144,128]{1,0:T(1,128)}', space=vmem, size = 0x12000, scoped, tag = 'internal scratch']
  %s0 = inlined_call_operand.vmem [shape: f32[2,1024], index: 0, kind: input, shape index: {}]
  %s1 = inlined_call_operand.vmem [shape: f32[2,1024], index: 1, kind: output, shape index: {}]
  %s2 = sld [smem:[#allocation0]]
  $region14: #{_superblock_forward_impl.1} parent=0
    _
  %s4 = ssub.s32 1, %s2
  %s5 = scalar_select 0, %s4, %s2
  // Predicated region
  $region2: #{_superblock_forward_impl.1} parent=0 // pred_check
    _
  $region3: #{_superblock_forward_impl.1} parent=0 // pred_check_branch
    %7 = sbr.rel (0) target = $region5
  $region4: #{_superblock_forward_impl.1} parent=0 // pred_region
    _
  $region5: #{_superblock_forward_impl.1} parent=0 // pred_fallthru
    _
  %v8 = vld [vmem:[%s0] sm:$0xff]
  %v9 = vld [vmem:[%s0 + $0x8] sm:$0xff]
  %v10 = vadd.f32 %v8, %v8
  %v11 = vadd.f32 %v9, %v9
  %12 = vst [vmem:[%s1] sm:$0xff] %v10
  %13 = vst [vmem:[%s1 + $0x8] sm:$0xff] %v11
  // Predicated region
  $region6: #{_superblock_forward_impl.1} parent=0 // pred_check
    _
  $region7: #{_superblock_forward_impl.1} parent=0 // pred_check_branch
    %15 = sbr.rel (0) target = $region9
  $region8: #{_superblock_forward_impl.1} parent=0 // pred_region
    _
  $region9: #{_superblock_forward_impl.1} parent=0 // pred_fallthru
    _
  // Predicated region
  $region10: #{_superblock_forward_impl.1} parent=0 // pred_check
    _
  $region11: #{_superblock_forward_impl.1} parent=0 // pred_check_branch
    %17 = sbr.rel (0) target = $region13
  $region12: #{_superblock_forward_impl.1} parent=0 // pred_region
    _
  $region13: #{_superblock_forward_impl.1} parent=0 // pred_fallthru
    _

</llo_original>
